<compile_context>
chip_gen: v7x
topology: tpu7x:2x2x1
jax: 0.10.0
libtpu: 0.0.40
codegen_flags: <defaults>
</compile_context>

<pallas_src>
import functools
import math

import jax
import jax.numpy as jnp
from jax import lax
from jax.experimental import pallas as pl
from jax.experimental.pallas import tpu as pltpu


def _softmax_last(x):
    x = x - jnp.max(x, axis=-1, keepdims=True)
    e = jnp.exp(x)
    return e / jnp.sum(e, axis=-1, keepdims=True)


def emm_ntm_kernel(
    # inputs
    h_ref, wr0_ref, ww0_ref, mT0_ref, w_all_ref, b_all_ref,
    # outputs
    r_ref, wr_out_ref, ww_out_ref, mT_out_ref,
    # scratch (persists across the T grid steps)
    w_state_sc, mT_sc,
    *, num_reads, num_shifts,
):
    t = pl.program_id(0)
    n_steps = pl.num_programs(0)

    R, S = num_reads, num_shifts
    B, N = ww0_ref.shape          # batch, memory rows
    M = mT0_ref.shape[0]          # memory cols (feature dim)

    # ---- t == 0: stage the recurrent state into VMEM scratch (resident for all T steps) ----
    @pl.when(t == 0)
    def _init():
        w_state_sc[0:B, :] = ww0_ref[...]                     # rows [0:B]   = write weights
        for r in range(R):                                    # rows [B + r*B : ...] = read weights
            w_state_sc[(1 + r) * B:(2 + r) * B, :] = wr0_ref[r]
        mT_sc[...] = mT0_ref[...]                             # (M, N) lane-dense memory

    h = h_ref[0]                        # (B, H) controller state for this timestep
    w_prev = w_state_sc[...]            # ((R+1)*B, N)  OLD weights (ww first, then wr groups)
    mT = mT_sc[...]                     # (M, N)        OLD memory (transposed)

    # ---- all 6 heads (key/beta/gate/shift/erase/add) in ONE fused matmul ----
    heads = (jnp.dot(h, w_all_ref[...], preferred_element_type=jnp.float32)
             + b_all_ref[...])                                   # (B, 3M + 2 + S)
    o = 0
    k_t = jnp.clip(heads[:, o:o + M], 0.0, 1.0); o += M          # clamp(relu(.),0,1) == clip
    beta_t = jnp.maximum(heads[:, o:o + 1], 0.0); o += 1         # relu
    g_t = jnp.clip(heads[:, o:o + 1], 0.0, 1.0); o += 1          # clamp(hardtanh[0,1]) == clip
    s_t = _softmax_last(heads[:, o:o + S]); o += S
    ea = jnp.clip(heads[:, o:], 0.0, 1.0)                        # (B, 2M) erase|add, one slice+clip
    # NOTE: gamma head / sharpening is dead code in the reference (_weight_update returns w_tilde).

    # ---- content addressing: one matmul on rsqrt-normalized operands (no denominator matmul) ----
    # TODO(synk): cosine_similarity helper is not defined in the reference file; standard NTM
    # cosine with each norm clamped at eps=1e-8 is assumed.
    k_inv = lax.rsqrt(jnp.maximum(jnp.sum(k_t * k_t, axis=1, keepdims=True), 1e-16))   # (B, 1)
    m_inv = lax.rsqrt(jnp.maximum(jnp.sum(mT * mT, axis=0, keepdims=True), 1e-16))     # (1, N)
    sim = jnp.dot(k_t * k_inv, mT * m_inv, preferred_element_type=jnp.float32)         # (B, N)
    w_c = _softmax_last(sim * beta_t)                                                  # (B, N)

    # ---- interpolation + circular convolution for [ww ; wr_0 .. wr_{R-1}] ----
    # TODO(synk): circular_convolution helper is not defined in the reference file; the standard
    # NTM convention w~(i) = sum_j s(j) * w_g((i - off_j) mod N), offsets centered, is assumed.
    gwc = g_t * w_c                                              # shared across all row groups
    c = S // 2
    w_new_groups = []
    for grp in range(R + 1):
        w_prev_g = w_prev[grp * B:(grp + 1) * B, :]              # (B, N) static sublane slice
        w_g = gwc + (1.0 - g_t) * w_prev_g                       # (B, N)
        w_new_g = s_t[:, c:c + 1] * w_g                          # zero-shift term: no rotation
        for j in range(S):
            if j == c:
                continue
            w_new_g = w_new_g + s_t[:, j:j + 1] * pltpu.roll(w_g, (j - c) % N, axis=1)
        w_new_groups.append(w_new_g)

    # ---- memory write (OLD ww, OLD m): erase/add outer products fused in one (2M, N) matmul ----
    ww_old = w_prev[0:B, :]                                                   # (B, N)
    mem_ea = lax.dot_general(ea, ww_old, (((0,), (0,)), ((), ())),
                             preferred_element_type=jnp.float32)              # (2M, N)
    mT_new = mT * (1.0 - mem_ea[:M]) + mem_ea[M:]                             # (M, N) lane-dense

    # ---- memory read (OLD wr, OLD m): all reads fused in one matmul ----
    wr_old = w_prev[B:, :]                                                    # (R*B, N)
    reads = lax.dot_general(wr_old, mT, (((1,), (1,)), ((), ())),
                            preferred_element_type=jnp.float32)               # (R*B, M)
    if R == 1:
        r_ref[0, 0] = reads                                                   # (B, M)
    else:
        for r in range(R):
            r_ref[0, r] = reads[r * B:(r + 1) * B, :]

    # ---- advance the resident state (all writes AFTER every consumer of the old state) ----
    for grp in range(R + 1):
        w_state_sc[grp * B:(grp + 1) * B, :] = w_new_groups[grp]
    mT_sc[...] = mT_new

    # ---- last step: emit the final state (buffers aliased onto the state inputs) ----
    @pl.when(t == n_steps - 1)
    def _finalize():
        ww_out_ref[...] = w_state_sc[0:B, :]
        for r in range(R):
            wr_out_ref[r] = w_state_sc[(1 + r) * B:(2 + r) * B, :]
        mT_out_ref[...] = mT_sc[...]


def emm_ntm_scan(h_seq, wr, ww, m, params, *, num_shifts=3):
    """Apply EMM_NTM.forward for T consecutive controller states h_seq[t] in ONE pallas_call.

    Returns (r_seq, wr_T, ww_T, m_T); r_seq[t] equals the read output of step t (post-squeeze for
    num_reads == 1), identical to chaining the single-step forward T times."""
    T, B, H = h_seq.shape
    R = wr.shape[0]
    N, M = m.shape
    S = num_shifts

    # Fuse all head linears into one (H, 3M+2+S) weight / bias; erase & add are last + contiguous.
    names = ("key", "beta", "gate", "shift", "erase", "add")
    w_all = jnp.concatenate([params[n][0] for n in names], axis=1)
    b_all = jnp.concatenate([params[n][1] for n in names], axis=1)
    D = 3 * M + 2 + S

    mT = m.T   # memory kept lane-dense as (M, N) inside the kernel; transposed once per call

    kernel = functools.partial(emm_ntm_kernel, num_reads=R, num_shifts=S)

    grid_spec = pltpu.PrefetchScalarGridSpec(
        num_scalar_prefetch=0,
        grid=(T,),
        in_specs=[
            pl.BlockSpec((1, B, H), lambda t: (t, 0, 0)),   # h_t: streamed one step per iteration
            pl.BlockSpec((R, B, N), lambda t: (0, 0, 0)),   # wr0:   DMA'd once, stays resident
            pl.BlockSpec((B, N), lambda t: (0, 0)),         # ww0
            pl.BlockSpec((M, N), lambda t: (0, 0)),         # m0 (transposed)
            pl.BlockSpec((H, D), lambda t: (0, 0)),         # fused head weights
            pl.BlockSpec((1, D), lambda t: (0, 0)),         # fused head bias
        ],
        out_specs=(
            pl.BlockSpec((1, R, B, M), lambda t: (t, 0, 0, 0)),  # r_t streamed out per iteration
            pl.BlockSpec((R, B, N), lambda t: (0, 0, 0)),        # final wr
            pl.BlockSpec((B, N), lambda t: (0, 0)),              # final ww
            pl.BlockSpec((M, N), lambda t: (0, 0)),              # final m (transposed)
        ),
        scratch_shapes=[
            pltpu.VMEM(((R + 1) * B, N), jnp.float32),   # resident [ww ; wr] weights
            pltpu.VMEM((M, N), jnp.float32),             # resident transposed memory
        ],
    )

    r_seq, wr_t, ww_t, mT_t = pl.pallas_call(
        kernel,
        grid_spec=grid_spec,
        out_shape=(
            jax.ShapeDtypeStruct((T, R, B, M), jnp.float32),
            jax.ShapeDtypeStruct((R, B, N), jnp.float32),
            jax.ShapeDtypeStruct((B, N), jnp.float32),
            jax.ShapeDtypeStruct((M, N), jnp.float32),
        ),
        compiler_params=pltpu.CompilerParams(
            dimension_semantics=("arbitrary",)),      # recurrent timestep axis: strictly serial
        input_output_aliases={1: 1, 2: 2, 3: 3},      # state buffers reused for the final state
    )(h_seq, wr, ww, mT, w_all, b_all)

    m_t = mT_t.T
    if R == 1:
        r_out = r_seq[:, 0]                           # (T, B, M)  == per-step torch .squeeze(1)
    else:
        r_out = jnp.transpose(r_seq, (0, 2, 1, 3))    # (T, B, R, M); free layout fix outside
    return r_out, wr_t, ww_t, m_t


def emm_ntm_forward(h_t, wr, ww, m, params, *, num_shifts=3):
    """Exact single-step equivalent of EMM_NTM.forward (T == 1 rollout)."""
    r_seq, wr_t, ww_t, m_t = emm_ntm_scan(h_t[None], wr, ww, m, params, num_shifts=num_shifts)
    return r_seq[0], wr_t, ww_t, m_t


def init_linear(key, in_dim, out_dim):
    # Deterministic init mimicking torch.nn.Linear default: U(-1/sqrt(in), 1/sqrt(in)).
    bound = 1.0 / math.sqrt(in_dim)
    kw, kb = jax.random.split(key)
    w = jax.random.uniform(kw, (in_dim, out_dim), jnp.float32, -bound, bound)
    b = jax.random.uniform(kb, (1, out_dim), jnp.float32, -bound, bound)
    return w, b


if __name__ == "__main__":
    B = 2            # batch_size
    H = 32           # num_hidden
    R = 1            # num_reads
    S = 3            # num_shifts
    N, M = 128, 20   # memory_dims
    T = 6            # rollout length for the scanned (in-kernel timestep loop) variant

    root = jax.random.PRNGKey(0)
    keys = jax.random.split(root, 10)

    params = {
        "key":   init_linear(keys[0], H, M),
        "beta":  init_linear(keys[1], H, 1),
        "gate":  init_linear(keys[2], H, 1),
        "shift": init_linear(keys[3], H, S),
        "gamma": init_linear(keys[4], H, 1),  # parity with reference; dead code in its forward
        "erase": init_linear(keys[5], H, M),
        "add":   init_linear(keys[6], H, M),
    }

    # Inputs matching EMM_NTM.init_weights_mem()
    h_seq = jax.random.normal(keys[7], (T, B, H), jnp.float32)
    m0 = jax.random.uniform(keys[8], (N, M), jnp.float32) * 0.01
    ww0 = jnp.eye(B, N, dtype=jnp.float32)
    wr0 = jnp.zeros((R, B, N), jnp.float32).at[:, 0, 0].set(1.0)

    step_fn = jax.jit(functools.partial(emm_ntm_forward, num_shifts=S))
    scan_fn = jax.jit(functools.partial(emm_ntm_scan, num_shifts=S))

    # --- single step: exact EMM_NTM.forward semantics ---
    r1, wr1, ww1, m1 = step_fn(h_seq[0], wr0, ww0, m0, params)
    jax.block_until_ready((r1, wr1, ww1, m1))
    assert r1.shape == (B, M)
    assert wr1.shape == (R, B, N)
    assert ww1.shape == (B, N)
    assert m1.shape == (N, M)

    # --- scanned variant: T forward steps in one pallas_call, state resident in VMEM ---
    r_seq, wr_T, ww_T, m_T = scan_fn(h_seq, wr0, ww0, m0, params)
    jax.block_until_ready((r_seq, wr_T, ww_T, m_T))
    assert r_seq.shape == (T, B, M)

    # cross-check the in-kernel recurrence against chaining T single-step calls
    wr_s, ww_s, m_s = wr0, ww0, m0
    r_list = []
    for t in range(T):
        r_t, wr_s, ww_s, m_s = step_fn(h_seq[t], wr_s, ww_s, m_s, params)
        r_list.append(r_t)
    r_chain = jnp.stack(r_list, axis=0)

    assert bool(jnp.all(jnp.isfinite(r_seq))) and bool(jnp.all(jnp.isfinite(m_T)))
    assert bool(jnp.allclose(r_seq, r_chain, atol=1e-4, rtol=1e-4))
    assert bool(jnp.allclose(wr_T, wr_s, atol=1e-4, rtol=1e-4))
    assert bool(jnp.allclose(ww_T, ww_s, atol=1e-4, rtol=1e-4))
    assert bool(jnp.allclose(m_T, m_s, atol=1e-4, rtol=1e-4))
    print("KERNEL_OK")
</pallas_src>

<mosaic_0001>
module attributes {stable_mosaic.version = 11 : i64} {
  func.func @emm_ntm_kernel(%arg0: i32, %arg1: memref<1x2x32xf32, #tpu.memory_space<vmem>>, %arg2: memref<1x2x128xf32, #tpu.memory_space<vmem>>, %arg3: memref<2x128xf32, #tpu.memory_space<vmem>>, %arg4: memref<20x128xf32, #tpu.memory_space<vmem>>, %arg5: memref<32x65xf32, #tpu.memory_space<vmem>>, %arg6: memref<1x65xf32, #tpu.memory_space<vmem>>, %arg7: memref<1x1x2x20xf32, #tpu.memory_space<vmem>>, %arg8: memref<1x2x128xf32, #tpu.memory_space<vmem>>, %arg9: memref<2x128xf32, #tpu.memory_space<vmem>>, %arg10: memref<20x128xf32, #tpu.memory_space<vmem>>, %arg11: memref<4x128xf32, #tpu.memory_space<vmem>>, %arg12: memref<20x128xf32, #tpu.memory_space<vmem>>) attributes {dimension_semantics = [#tpu.dimension_semantics<arbitrary>], iteration_bounds = array<i64: 1>, scalar_prefetch = 0 : i64, scratch_operands = 2 : i64, tpu.core_type = #tpu.core_type<tc>, window_params = [{transform_indices = @transform_0, window_bounds = array<i64: 1, 2, 32>}, {pipeline_mode = #tpu.pipeline_mode<synchronous>, transform_indices = @transform_1, window_bounds = array<i64: 1, 2, 128>}, {pipeline_mode = #tpu.pipeline_mode<synchronous>, transform_indices = @transform_2, window_bounds = array<i64: 2, 128>}, {pipeline_mode = #tpu.pipeline_mode<synchronous>, transform_indices = @transform_3, window_bounds = array<i64: 20, 128>}, {pipeline_mode = #tpu.pipeline_mode<synchronous>, transform_indices = @transform_4, window_bounds = array<i64: 32, 65>}, {pipeline_mode = #tpu.pipeline_mode<synchronous>, transform_indices = @transform_5, window_bounds = array<i64: 1, 65>}, {transform_indices = @transform_6, window_bounds = array<i64: 1, 1, 2, 20>}, {pipeline_mode = #tpu.pipeline_mode<synchronous>, transform_indices = @transform_7, window_bounds = array<i64: 1, 2, 128>}, {pipeline_mode = #tpu.pipeline_mode<synchronous>, transform_indices = @transform_8, window_bounds = array<i64: 2, 128>}, {pipeline_mode = #tpu.pipeline_mode<synchronous>, transform_indices = @transform_9, window_bounds = array<i64: 20, 128>}]} {
    %c0_i32 = arith.constant 0 : i32
    %0 = arith.cmpi eq, %arg0, %c0_i32 : i32
    %1 = arith.extui %0 : i1 to i32
    %c0_i32_0 = arith.constant 0 : i32
    %2 = arith.cmpi ne, %1, %c0_i32_0 : i32
    scf.if %2 {
      %c0_45 = arith.constant 0 : index
      %c0_46 = arith.constant 0 : index
      %127 = vector.load %arg3[%c0_45, %c0_46] : memref<2x128xf32, #tpu.memory_space<vmem>>, vector<2x128xf32>
      %c0_47 = arith.constant 0 : index
      %c0_48 = arith.constant 0 : index
      %128 = vector.load %arg11[%c0_47, %c0_48] : memref<4x128xf32, #tpu.memory_space<vmem>>, vector<2x128xf32>
      tpu.vector_store %arg11[%c0_47, %c0_48], %127 {strides = array<i32>} : memref<4x128xf32, #tpu.memory_space<vmem>>, vector<2x128xf32>,
      %c0_49 = arith.constant 0 : index
      %c0_50 = arith.constant 0 : index
      %c0_51 = arith.constant 0 : index
      %129 = vector.load %arg2[%c0_49, %c0_50, %c0_51] : memref<1x2x128xf32, #tpu.memory_space<vmem>>, vector<1x2x128xf32>
      %130 = vector.shape_cast %129 : vector<1x2x128xf32> to vector<2x128xf32>
      %c2_52 = arith.constant 2 : index
      %c0_53 = arith.constant 0 : index
      %131 = vector.load %arg11[%c2_52, %c0_53] : memref<4x128xf32, #tpu.memory_space<vmem>>, vector<2x128xf32>
      tpu.vector_store %arg11[%c2_52, %c0_53], %130 {strides = array<i32>} : memref<4x128xf32, #tpu.memory_space<vmem>>, vector<2x128xf32>,
      %c0_54 = arith.constant 0 : index
      %c0_55 = arith.constant 0 : index
      %132 = vector.load %arg4[%c0_54, %c0_55] : memref<20x128xf32, #tpu.memory_space<vmem>>, vector<20x128xf32>
      %c0_56 = arith.constant 0 : index
      %c0_57 = arith.constant 0 : index
      %133 = vector.load %arg12[%c0_56, %c0_57] : memref<20x128xf32, #tpu.memory_space<vmem>>, vector<20x128xf32>
      tpu.vector_store %arg12[%c0_56, %c0_57], %132 {strides = array<i32>} : memref<20x128xf32, #tpu.memory_space<vmem>>, vector<20x128xf32>,
    } else {
    }
    %c0 = arith.constant 0 : index
    %c0_1 = arith.constant 0 : index
    %c0_2 = arith.constant 0 : index
    %3 = vector.load %arg1[%c0, %c0_1, %c0_2] : memref<1x2x32xf32, #tpu.memory_space<vmem>>, vector<1x2x32xf32>
    %4 = vector.shape_cast %3 : vector<1x2x32xf32> to vector<2x32xf32>
    %c0_3 = arith.constant 0 : index
    %c0_4 = arith.constant 0 : index
    %5 = vector.load %arg11[%c0_3, %c0_4] : memref<4x128xf32, #tpu.memory_space<vmem>>, vector<4x128xf32>
    %c0_5 = arith.constant 0 : index
    %c0_6 = arith.constant 0 : index
    %6 = vector.load %arg12[%c0_5, %c0_6] : memref<20x128xf32, #tpu.memory_space<vmem>>, vector<20x128xf32>
    %c0_7 = arith.constant 0 : index
    %c0_8 = arith.constant 0 : index
    %7 = vector.load %arg5[%c0_7, %c0_8] : memref<32x65xf32, #tpu.memory_space<vmem>>, vector<32x65xf32>
    %cst = arith.constant dense<0.000000e+00> : vector<2x65xf32>
    %8 = tpu.matmul %4, %7, %cst {dimension_numbers = #tpu.dot_dimension_numbers<[1], [0], [0], [1], [0, 0, 1, 1], [], []>} : vector<2x32xf32>, vector<32x65xf32>, vector<2x65xf32> -> vector<2x65xf32>
    %c0_9 = arith.constant 0 : index
    %c0_10 = arith.constant 0 : index
    %9 = vector.load %arg6[%c0_9, %c0_10] : memref<1x65xf32, #tpu.memory_space<vmem>>, vector<1x65xf32>
    %10 = vector.broadcast %9 : vector<1x65xf32> to vector<2x65xf32>
    %11 = arith.addf %8, %10 : vector<2x65xf32>
    %12 = vector.extract_strided_slice %11 {offsets = [0, 0], sizes = [2, 20], strides = [1, 1]} : vector<2x65xf32> to vector<2x20xf32>
    %cst_11 = arith.constant 0.000000e+00 : f32
    %cst_12 = arith.constant 1.000000e+00 : f32
    %13 = vector.broadcast %cst_11 : f32 to vector<2x20xf32>
    %14 = arith.maximumf %13, %12 : vector<2x20xf32>
    %15 = vector.broadcast %cst_12 : f32 to vector<2x20xf32>
    %16 = arith.minimumf %15, %14 : vector<2x20xf32>
    %17 = vector.extract_strided_slice %11 {offsets = [0, 20], sizes = [2, 1], strides = [1, 1]} : vector<2x65xf32> to vector<2x1xf32>
    %cst_13 = arith.constant 0.000000e+00 : f32
    %18 = vector.broadcast %cst_13 : f32 to vector<2x1xf32>
    %19 = arith.maximumf %17, %18 : vector<2x1xf32>
    %20 = vector.extract_strided_slice %11 {offsets = [0, 21], sizes = [2, 1], strides = [1, 1]} : vector<2x65xf32> to vector<2x1xf32>
    %cst_14 = arith.constant 0.000000e+00 : f32
    %cst_15 = arith.constant 1.000000e+00 : f32
    %21 = vector.broadcast %cst_14 : f32 to vector<2x1xf32>
    %22 = arith.maximumf %21, %20 : vector<2x1xf32>
    %23 = vector.broadcast %cst_15 : f32 to vector<2x1xf32>
    %24 = arith.minimumf %23, %22 : vector<2x1xf32>
    %25 = vector.extract_strided_slice %11 {offsets = [0, 22], sizes = [2, 3], strides = [1, 1]} : vector<2x65xf32> to vector<2x3xf32>
    %cst_16 = arith.constant dense<0xFF800000> : vector<2xf32>
    %26 = vector.multi_reduction <maximumf>, %25, %cst_16 [1] : vector<2x3xf32> to vector<2xf32>
    %27 = vector.shape_cast %26 : vector<2xf32> to vector<2x1xf32>
    %28 = vector.broadcast %27 : vector<2x1xf32> to vector<2x3xf32>
    %29 = arith.subf %25, %28 : vector<2x3xf32>
    %30 = math.exp %29 : vector<2x3xf32>
    %cst_17 = arith.constant dense<0.000000e+00> : vector<2xf32>
    %31 = vector.multi_reduction <add>, %30, %cst_17 [1] : vector<2x3xf32> to vector<2xf32>
    %32 = vector.shape_cast %31 : vector<2xf32> to vector<2x1xf32>
    %33 = vector.broadcast %32 : vector<2x1xf32> to vector<2x3xf32>
    %34 = arith.divf %30, %33 : vector<2x3xf32>
    %35 = vector.extract_strided_slice %11 {offsets = [0, 25], sizes = [2, 40], strides = [1, 1]} : vector<2x65xf32> to vector<2x40xf32>
    %cst_18 = arith.constant 0.000000e+00 : f32
    %cst_19 = arith.constant 1.000000e+00 : f32
    %36 = vector.broadcast %cst_18 : f32 to vector<2x40xf32>
    %37 = arith.maximumf %36, %35 : vector<2x40xf32>
    %38 = vector.broadcast %cst_19 : f32 to vector<2x40xf32>
    %39 = arith.minimumf %38, %37 : vector<2x40xf32>
    %40 = arith.mulf %16, %16 : vector<2x20xf32>
    %cst_20 = arith.constant dense<0.000000e+00> : vector<2xf32>
    %41 = vector.multi_reduction <add>, %40, %cst_20 [1] : vector<2x20xf32> to vector<2xf32>
    %42 = vector.shape_cast %41 : vector<2xf32> to vector<2x1xf32>
    %cst_21 = arith.constant 1.000000e-16 : f32
    %43 = vector.broadcast %cst_21 : f32 to vector<2x1xf32>
    %44 = arith.maximumf %42, %43 : vector<2x1xf32>
    %45 = math.rsqrt %44 : vector<2x1xf32>
    %46 = arith.mulf %6, %6 : vector<20x128xf32>
    %cst_22 = arith.constant dense<0.000000e+00> : vector<128xf32>
    %47 = vector.multi_reduction <add>, %46, %cst_22 [0] : vector<20x128xf32> to vector<128xf32>
    %48 = vector.shape_cast %47 : vector<128xf32> to vector<1x128xf32>
    %cst_23 = arith.constant 1.000000e-16 : f32
    %49 = vector.broadcast %cst_23 : f32 to vector<1x128xf32>
    %50 = arith.maximumf %48, %49 : vector<1x128xf32>
    %51 = math.rsqrt %50 : vector<1x128xf32>
    %52 = vector.broadcast %45 : vector<2x1xf32> to vector<2x20xf32>
    %53 = arith.mulf %16, %52 : vector<2x20xf32>
    %54 = vector.broadcast %51 : vector<1x128xf32> to vector<20x128xf32>
    %55 = arith.mulf %6, %54 : vector<20x128xf32>
    %cst_24 = arith.constant dense<0.000000e+00> : vector<2x128xf32>
    %56 = tpu.matmul %53, %55, %cst_24 {dimension_numbers = #tpu.dot_dimension_numbers<[1], [0], [0], [1], [0, 0, 1, 1], [], []>} : vector<2x20xf32>, vector<20x128xf32>, vector<2x128xf32> -> vector<2x128xf32>
    %57 = vector.broadcast %19 : vector<2x1xf32> to vector<2x128xf32>
    %58 = arith.mulf %56, %57 : vector<2x128xf32>
    %cst_25 = arith.constant dense<0xFF800000> : vector<2xf32>
    %59 = vector.multi_reduction <maximumf>, %58, %cst_25 [1] : vector<2x128xf32> to vector<2xf32>
    %60 = vector.shape_cast %59 : vector<2xf32> to vector<2x1xf32>
    %61 = vector.broadcast %60 : vector<2x1xf32> to vector<2x128xf32>
    %62 = arith.subf %58, %61 : vector<2x128xf32>
    %63 = math.exp %62 : vector<2x128xf32>
    %cst_26 = arith.constant dense<0.000000e+00> : vector<2xf32>
    %64 = vector.multi_reduction <add>, %63, %cst_26 [1] : vector<2x128xf32> to vector<2xf32>
    %65 = vector.shape_cast %64 : vector<2xf32> to vector<2x1xf32>
    %66 = vector.broadcast %65 : vector<2x1xf32> to vector<2x128xf32>
    %67 = arith.divf %63, %66 : vector<2x128xf32>
    %68 = vector.broadcast %24 : vector<2x1xf32> to vector<2x128xf32>
    %69 = arith.mulf %68, %67 : vector<2x128xf32>
    %70 = vector.extract_strided_slice %5 {offsets = [0, 0], sizes = [2, 128], strides = [1, 1]} : vector<4x128xf32> to vector<2x128xf32>
    %cst_27 = arith.constant 1.000000e+00 : f32
    %71 = vector.broadcast %cst_27 : f32 to vector<2x1xf32>
    %72 = arith.subf %71, %24 : vector<2x1xf32>
    %73 = vector.broadcast %72 : vector<2x1xf32> to vector<2x128xf32>
    %74 = arith.mulf %73, %70 : vector<2x128xf32>
    %75 = arith.addf %69, %74 : vector<2x128xf32>
    %76 = vector.extract_strided_slice %34 {offsets = [0, 1], sizes = [2, 1], strides = [1, 1]} : vector<2x3xf32> to vector<2x1xf32>
    %77 = vector.broadcast %76 : vector<2x1xf32> to vector<2x128xf32>
    %78 = arith.mulf %77, %75 : vector<2x128xf32>
    %79 = vector.extract_strided_slice %34 {offsets = [0, 0], sizes = [2, 1], strides = [1, 1]} : vector<2x3xf32> to vector<2x1xf32>
    %c127_i32 = arith.constant 127 : i32
    %80 = tpu.dynamic_rotate %75 by %c127_i32 dim 1 : vector<2x128xf32>, i32 -> vector<2x128xf32>
    %81 = vector.broadcast %79 : vector<2x1xf32> to vector<2x128xf32>
    %82 = arith.mulf %81, %80 : vector<2x128xf32>
    %83 = arith.addf %78, %82 : vector<2x128xf32>
    %84 = vector.extract_strided_slice %34 {offsets = [0, 2], sizes = [2, 1], strides = [1, 1]} : vector<2x3xf32> to vector<2x1xf32>
    %c1_i32 = arith.constant 1 : i32
    %85 = tpu.dynamic_rotate %75 by %c1_i32 dim 1 : vector<2x128xf32>, i32 -> vector<2x128xf32>
    %86 = vector.broadcast %84 : vector<2x1xf32> to vector<2x128xf32>
    %87 = arith.mulf %86, %85 : vector<2x128xf32>
    %88 = arith.addf %83, %87 : vector<2x128xf32>
    %89 = vector.extract_strided_slice %5 {offsets = [2, 0], sizes = [2, 128], strides = [1, 1]} : vector<4x128xf32> to vector<2x128xf32>
    %cst_28 = arith.constant 1.000000e+00 : f32
    %90 = vector.broadcast %cst_28 : f32 to vector<2x1xf32>
    %91 = arith.subf %90, %24 : vector<2x1xf32>
    %92 = vector.broadcast %91 : vector<2x1xf32> to vector<2x128xf32>
    %93 = arith.mulf %92, %89 : vector<2x128xf32>
    %94 = arith.addf %69, %93 : vector<2x128xf32>
    %95 = vector.extract_strided_slice %34 {offsets = [0, 1], sizes = [2, 1], strides = [1, 1]} : vector<2x3xf32> to vector<2x1xf32>
    %96 = vector.broadcast %95 : vector<2x1xf32> to vector<2x128xf32>
    %97 = arith.mulf %96, %94 : vector<2x128xf32>
    %98 = vector.extract_strided_slice %34 {offsets = [0, 0], sizes = [2, 1], strides = [1, 1]} : vector<2x3xf32> to vector<2x1xf32>
    %c127_i32_29 = arith.constant 127 : i32
    %99 = tpu.dynamic_rotate %94 by %c127_i32_29 dim 1 : vector<2x128xf32>, i32 -> vector<2x128xf32>
    %100 = vector.broadcast %98 : vector<2x1xf32> to vector<2x128xf32>
    %101 = arith.mulf %100, %99 : vector<2x128xf32>
    %102 = arith.addf %97, %101 : vector<2x128xf32>
    %103 = vector.extract_strided_slice %34 {offsets = [0, 2], sizes = [2, 1], strides = [1, 1]} : vector<2x3xf32> to vector<2x1xf32>
    %c1_i32_30 = arith.constant 1 : i32
    %104 = tpu.dynamic_rotate %94 by %c1_i32_30 dim 1 : vector<2x128xf32>, i32 -> vector<2x128xf32>
    %105 = vector.broadcast %103 : vector<2x1xf32> to vector<2x128xf32>
    %106 = arith.mulf %105, %104 : vector<2x128xf32>
    %107 = arith.addf %102, %106 : vector<2x128xf32>
    %108 = vector.extract_strided_slice %5 {offsets = [0, 0], sizes = [2, 128], strides = [1, 1]} : vector<4x128xf32> to vector<2x128xf32>
    %cst_31 = arith.constant dense<0.000000e+00> : vector<40x128xf32>
    %109 = tpu.matmul %39, %108, %cst_31 {dimension_numbers = #tpu.dot_dimension_numbers<[0], [0], [1], [1], [0, 1, 1, 1], [], []>} : vector<2x40xf32>, vector<2x128xf32>, vector<40x128xf32> -> vector<40x128xf32>
    %110 = vector.extract_strided_slice %109 {offsets = [0, 0], sizes = [20, 128], strides = [1, 1]} : vector<40x128xf32> to vector<20x128xf32>
    %cst_32 = arith.constant 1.000000e+00 : f32
    %111 = vector.broadcast %cst_32 : f32 to vector<20x128xf32>
    %112 = arith.subf %111, %110 : vector<20x128xf32>
    %113 = arith.mulf %6, %112 : vector<20x128xf32>
    %114 = vector.extract_strided_slice %109 {offsets = [20, 0], sizes = [20, 128], strides = [1, 1]} : vector<40x128xf32> to vector<20x128xf32>
    %115 = arith.addf %113, %114 : vector<20x128xf32>
    %116 = vector.extract_strided_slice %5 {offsets = [2, 0], sizes = [2, 128], strides = [1, 1]} : vector<4x128xf32> to vector<2x128xf32>
    %cst_33 = arith.constant dense<0.000000e+00> : vector<2x20xf32>
    %117 = tpu.matmul %116, %6, %cst_33 {dimension_numbers = #tpu.dot_dimension_numbers<[1], [1], [0], [0], [0, 0, 1, 0], [], []>} : vector<2x128xf32>, vector<20x128xf32>, vector<2x20xf32> -> vector<2x20xf32>
    %c0_34 = arith.constant 0 : index
    %c0_35 = arith.constant 0 : index
    %c0_36 = arith.constant 0 : index
    %c0_37 = arith.constant 0 : index
    %118 = vector.load %arg7[%c0_34, %c0_35, %c0_36, %c0_37] : memref<1x1x2x20xf32, #tpu.memory_space<vmem>>, vector<1x1x2x20xf32>
    %119 = vector.shape_cast %118 : vector<1x1x2x20xf32> to vector<2x20xf32>
    %120 = vector.shape_cast %117 : vector<2x20xf32> to vector<1x1x2x20xf32>
    tpu.vector_store %arg7[%c0_34, %c0_35, %c0_36, %c0_37], %120 {strides = array<i32>} : memref<1x1x2x20xf32, #tpu.memory_space<vmem>>, vector<1x1x2x20xf32>,
    %c0_38 = arith.constant 0 : index
    %c0_39 = arith.constant 0 : index
    %121 = vector.load %arg11[%c0_38, %c0_39] : memref<4x128xf32, #tpu.memory_space<vmem>>, vector<2x128xf32>
    tpu.vector_store %arg11[%c0_38, %c0_39], %88 {strides = array<i32>} : memref<4x128xf32, #tpu.memory_space<vmem>>, vector<2x128xf32>,
    %c2 = arith.constant 2 : index
    %c0_40 = arith.constant 0 : index
    %122 = vector.load %arg11[%c2, %c0_40] : memref<4x128xf32, #tpu.memory_space<vmem>>, vector<2x128xf32>
    tpu.vector_store %arg11[%c2, %c0_40], %107 {strides = array<i32>} : memref<4x128xf32, #tpu.memory_space<vmem>>, vector<2x128xf32>,
    %c0_41 = arith.constant 0 : index
    %c0_42 = arith.constant 0 : index
    %123 = vector.load %arg12[%c0_41, %c0_42] : memref<20x128xf32, #tpu.memory_space<vmem>>, vector<20x128xf32>
    tpu.vector_store %arg12[%c0_41, %c0_42], %115 {strides = array<i32>} : memref<20x128xf32, #tpu.memory_space<vmem>>, vector<20x128xf32>,
    %c0_i32_43 = arith.constant 0 : i32
    %124 = arith.cmpi eq, %arg0, %c0_i32_43 : i32
    %125 = arith.extui %124 : i1 to i32
    %c0_i32_44 = arith.constant 0 : i32
    %126 = arith.cmpi ne, %125, %c0_i32_44 : i32
    scf.if %126 {
      %c0_45 = arith.constant 0 : index
      %c0_46 = arith.constant 0 : index
      %127 = vector.load %arg11[%c0_45, %c0_46] : memref<4x128xf32, #tpu.memory_space<vmem>>, vector<2x128xf32>
      %c0_47 = arith.constant 0 : index
      %c0_48 = arith.constant 0 : index
      %128 = vector.load %arg9[%c0_47, %c0_48] : memref<2x128xf32, #tpu.memory_space<vmem>>, vector<2x128xf32>
      tpu.vector_store %arg9[%c0_47, %c0_48], %127 {strides = array<i32>} : memref<2x128xf32, #tpu.memory_space<vmem>>, vector<2x128xf32>,
      %c2_49 = arith.constant 2 : index
      %c0_50 = arith.constant 0 : index
      %129 = vector.load %arg11[%c2_49, %c0_50] : memref<4x128xf32, #tpu.memory_space<vmem>>, vector<2x128xf32>
      %c0_51 = arith.constant 0 : index
      %c0_52 = arith.constant 0 : index
      %c0_53 = arith.constant 0 : index
      %130 = vector.load %arg8[%c0_51, %c0_52, %c0_53] : memref<1x2x128xf32, #tpu.memory_space<vmem>>, vector<1x2x128xf32>
      %131 = vector.shape_cast %130 : vector<1x2x128xf32> to vector<2x128xf32>
      %132 = vector.shape_cast %129 : vector<2x128xf32> to vector<1x2x128xf32>
      tpu.vector_store %arg8[%c0_51, %c0_52, %c0_53], %132 {strides = array<i32>} : memref<1x2x128xf32, #tpu.memory_space<vmem>>, vector<1x2x128xf32>,
      %c0_54 = arith.constant 0 : index
      %c0_55 = arith.constant 0 : index
      %133 = vector.load %arg12[%c0_54, %c0_55] : memref<20x128xf32, #tpu.memory_space<vmem>>, vector<20x128xf32>
      %c0_56 = arith.constant 0 : index
      %c0_57 = arith.constant 0 : index
      %134 = vector.load %arg10[%c0_56, %c0_57] : memref<20x128xf32, #tpu.memory_space<vmem>>, vector<20x128xf32>
      tpu.vector_store %arg10[%c0_56, %c0_57], %133 {strides = array<i32>} : memref<20x128xf32, #tpu.memory_space<vmem>>, vector<20x128xf32>,
    } else {
    }
    return
  }
  func.func @transform_0(%arg0: i32) -> (i32, i32, i32) {
    %c0_i32 = arith.constant 0 : i32
    %c0_i32_0 = arith.constant 0 : i32
    %c0_i32_1 = arith.constant 0 : i32
    return %arg0, %c0_i32, %c0_i32_0 : i32, i32, i32
  }
  func.func @transform_1(%arg0: i32) -> (i32, i32, i32) {
    %c0_i32 = arith.constant 0 : i32
    %c0_i32_0 = arith.constant 0 : i32
    %c0_i32_1 = arith.constant 0 : i32
    %c0_i32_2 = arith.constant 0 : i32
    return %c0_i32, %c0_i32_0, %c0_i32_1 : i32, i32, i32
  }
  func.func @transform_2(%arg0: i32) -> (i32, i32) {
    %c0_i32 = arith.constant 0 : i32
    %c0_i32_0 = arith.constant 0 : i32
    %c0_i32_1 = arith.constant 0 : i32
    return %c0_i32, %c0_i32_0 : i32, i32
  }
  func.func @transform_3(%arg0: i32) -> (i32, i32) {
    %c0_i32 = arith.constant 0 : i32
    %c0_i32_0 = arith.constant 0 : i32
    %c0_i32_1 = arith.constant 0 : i32
    return %c0_i32, %c0_i32_0 : i32, i32
  }
  func.func @transform_4(%arg0: i32) -> (i32, i32) {
    %c0_i32 = arith.constant 0 : i32
    %c0_i32_0 = arith.constant 0 : i32
    %c0_i32_1 = arith.constant 0 : i32
    return %c0_i32, %c0_i32_0 : i32, i32
  }
  func.func @transform_5(%arg0: i32) -> (i32, i32) {
    %c0_i32 = arith.constant 0 : i32
    %c0_i32_0 = arith.constant 0 : i32
    %c0_i32_1 = arith.constant 0 : i32
    return %c0_i32, %c0_i32_0 : i32, i32
  }
  func.func @transform_6(%arg0: i32) -> (i32, i32, i32, i32) {
    %c0_i32 = arith.constant 0 : i32
    %c0_i32_0 = arith.constant 0 : i32
    %c0_i32_1 = arith.constant 0 : i32
    %c0_i32_2 = arith.constant 0 : i32
    return %arg0, %c0_i32, %c0_i32_0, %c0_i32_1 : i32, i32, i32, i32
  }
  func.func @transform_7(%arg0: i32) -> (i32, i32, i32) {
    %c0_i32 = arith.constant 0 : i32
    %c0_i32_0 = arith.constant 0 : i32
    %c0_i32_1 = arith.constant 0 : i32
    %c0_i32_2 = arith.constant 0 : i32
    return %c0_i32, %c0_i32_0, %c0_i32_1 : i32, i32, i32
  }
  func.func @transform_8(%arg0: i32) -> (i32, i32) {
    %c0_i32 = arith.constant 0 : i32
    %c0_i32_0 = arith.constant 0 : i32
    %c0_i32_1 = arith.constant 0 : i32
    return %c0_i32, %c0_i32_0 : i32, i32
  }
  func.func @transform_9(%arg0: i32) -> (i32, i32) {
    %c0_i32 = arith.constant 0 : i32
    %c0_i32_0 = arith.constant 0 : i32
    %c0_i32_1 = arith.constant 0 : i32
    return %c0_i32, %c0_i32_0 : i32, i32
  }
}

</mosaic_0001>

<llo_original>
// kernel: emm_ntm_forward.1
$region0: #{emm_ntm_forward.1}
  #allocation0 [shape = 'u32[]', space=smem, size = 0x4, offset = 0x4, fixed_abs, tag = 'smem constant byte address 0x4 - core index']
  #allocation1 [shape = 'u32[144,128]{1,0:T(1,128)}', space=vmem, size = 0x12000, scoped, tag = 'internal scratch']
  #allocation2 [shape = 'f32[4,128]{1,0:T(4,128)}', space=vmem, size = 0x800, scoped, tag = 'scratch operand']
  #allocation3 [shape = 'f32[20,128]{1,0:T(8,128)}', space=vmem, size = 0x3000, scoped, tag = 'scratch operand']
  %s0 = inlined_call_operand.vmem [shape: f32[1,2,32], index: 0, kind: input, shape index: {}]
  %s1 = inlined_call_operand.vmem [shape: f32[1,2,128], index: 1, kind: input, shape index: {}, may-alias: {1,7}]
  %s2 = inlined_call_operand.vmem [shape: f32[2,128], index: 2, kind: input, shape index: {}, may-alias: {2,8}]
  %s3 = inlined_call_operand.vmem [shape: f32[20,128], index: 3, kind: input, shape index: {}, may-alias: {3,9}]
  %s4 = inlined_call_operand.vmem [shape: f32[32,65], index: 4, kind: input, shape index: {}]
  %s5 = inlined_call_operand.vmem [shape: f32[1,65], index: 5, kind: input, shape index: {}]
  %s6 = inlined_call_operand.hbm [shape: f32[1,1,2,20], index: 6, kind: output, shape index: {0}]
  %s7 = inlined_call_operand.vmem [shape: f32[1,2,128], index: 7, kind: output, shape index: {1}, may-alias: {1,7}]
  %s8 = inlined_call_operand.vmem [shape: f32[2,128], index: 8, kind: output, shape index: {2}, may-alias: {2,8}]
  %s9 = inlined_call_operand.vmem [shape: f32[20,128], index: 9, kind: output, shape index: {3}, may-alias: {3,9}]
  %10 = xla_tuple %s6, %s7, %s8, %s9
  %s11 = sld [smem:[#allocation0]]
  $region66: #{emm_ntm_forward.1} parent=0
    _
  %s13 = ssub.s32 1, %s11
  %s14 = scalar_select 0, %s13, %s11
  $region1: #{emm_ntm_forward.1} parent=0
    #allocation4 [shape = 'u8[1024]{0}', space=vmem, size = 0x400, scoped, tag = 'output window, operand 0, single buffered']
    #allocation5 [shape = 's32[1]{0}', space=sflag, size = 0x4, scoped, tag = 'scoped memory for emm_ntm_forward.1']
    %15 = vsyncpa [#allocation5], 0
    // Predicated region
    $region2: #{emm_ntm_forward.1} parent=1 // pred_check
      _
    $region3: #{emm_ntm_forward.1} parent=1 // pred_check_branch
      %17 = sbr.rel (0) target = $region5
    $region4: #{emm_ntm_forward.1} parent=1 // pred_region
      _
    $region5: #{emm_ntm_forward.1} parent=1 // pred_fallthru
      _
    // Predicated region
    $region6: #{emm_ntm_forward.1} parent=1 // pred_check
      _
    $region7: #{emm_ntm_forward.1} parent=1 // pred_check_branch
      %19 = sbr.rel (0) target = $region9
    $region8: #{emm_ntm_forward.1} parent=1 // pred_region
      _
    $region9: #{emm_ntm_forward.1} parent=1 // pred_fallthru
      _
    // Predicated region
    $region10: #{emm_ntm_forward.1} parent=1 // pred_check
      _
    $region11: #{emm_ntm_forward.1} parent=1 // pred_check_branch
      %21 = sbr.rel (0) target = $region13
    $region12: #{emm_ntm_forward.1} parent=1 // pred_region
      _
    $region13: #{emm_ntm_forward.1} parent=1 // pred_fallthru
      _
    // Predicated region
    $region14: #{emm_ntm_forward.1} parent=1 // pred_check
      _
    $region15: #{emm_ntm_forward.1} parent=1 // pred_check_branch
      %23 = sbr.rel (0) target = $region17
    $region16: #{emm_ntm_forward.1} parent=1 // pred_region
      _
    $region17: #{emm_ntm_forward.1} parent=1 // pred_fallthru
      _
    // Predicated region
    $region18: #{emm_ntm_forward.1} parent=1 // pred_check
      _
    $region19: #{emm_ntm_forward.1} parent=1 // pred_check_branch
      %25 = sbr.rel (0) target = $region21
    $region20: #{emm_ntm_forward.1} parent=1 // pred_region
      _
    $region21: #{emm_ntm_forward.1} parent=1 // pred_fallthru
      _
    // Predicated region
    $region22: #{emm_ntm_forward.1} parent=1 // pred_check
      _
    $region23: #{emm_ntm_forward.1} parent=1 // pred_check_branch
      %27 = sbr.rel (0) target = $region25
    $region24: #{emm_ntm_forward.1} parent=1 // pred_region
      _
    $region25: #{emm_ntm_forward.1} parent=1 // pred_fallthru
      _
    %p28 = scmp.eq.s32.totalorder 0, 0
    // Predicated region
    $region26: #{emm_ntm_forward.1} parent=1 // pred_check
      %p29 = pneg %p28
    $region27: #{emm_ntm_forward.1} parent=1 // pred_check_branch
      %31 = sbr.rel (%p29) target = $region29
    $region28: #{emm_ntm_forward.1} parent=1 // pred_region
      %v32 = vld [vmem:[%s2] sm:$0x3]
      %33 = vst [vmem:[#allocation2] sm:$0x3] %v32
      %v34 = vld [vmem:[%s1] sm:$0x3]
      %35 = vst [vmem:[#allocation2 + $0x2] sm:$0x3] %v34
      %v36 = vld [vmem:[%s3] sm:$0xff]
      %v37 = vld [vmem:[%s3 + $0x8] sm:$0xff]
      %v38 = vld [vmem:[%s3 + $0x10] sm:$0xf]
      %39 = vst [vmem:[#allocation3] sm:$0xff] %v36
      %40 = vst [vmem:[#allocation3 + $0x8] sm:$0xff] %v37
      %41 = vst [vmem:[#allocation3 + $0x10] sm:$0xf] %v38
    $region29: #{emm_ntm_forward.1} parent=1 // pred_fallthru
      _
    %v42 = vld [vmem:[%s0] sm:$0x3]
    %v43 = vld [vmem:[#allocation2] sm:$0xf]
    %v44 = vld [vmem:[#allocation3] sm:$0xff]
    %v45 = vld [vmem:[#allocation3 + $0x8] sm:$0xff]
    %v46 = vld [vmem:[#allocation3 + $0x10] sm:$0xf]
    %v47 = vld [vmem:[%s4] sm:$0xff]
    %v48 = vld [vmem:[%s4 + $0x8] sm:$0xff]
    %v49 = vld [vmem:[%s4 + $0x10] sm:$0xff]
    %v50 = vld [vmem:[%s4 + $0x18] sm:$0xff]
    %v51 = vld [vmem:[%s5] sm:$0x1]
    %v53 = vlaneseq
    %v54 = vshrl.u32 %v53, 7
    %v55 = vsub.s32 0, %v54
    %v56 = vrot.slane %v51, %v55
    %vm58 = vcmask 261120
    %v60 = vsel %vm58, %v42, 0
    %62 = vmatprep.subr.mxu0 0.0
    %63 = vmatpush1.msra.mxu0 %v47
    %64 = vmatprep.subr.mxu0 0.0
    %65 = vmatpush1.msra.mxu0 %v48
    %66 = vmatprep.subr.mxu0 0.0
    %67 = vmatpush1.msra.mxu0 %v49
    %68 = vmatprep.subr.mxu0 0.0
    %69 = vmatpush1.msra.mxu0 %v50
    %70 = vmatprep.subr.mxu0 0.0
    %71 = vmatpush1.msra.mxu0 0.0
    %72 = vmatprep.subr.mxu0 0.0
    %73 = vmatpush1.msra.mxu0 0.0
    %74 = vmatprep.subr.mxu0 0.0
    %75 = vmatpush1.msra.mxu0 0.0
    %76 = vmatprep.subr.mxu0 0.0
    %77 = vmatpush1.msra.mxu0 0.0
    %78 = vmatprep.subr.mxu0 0.0
    %79 = vmatpush1.msra.mxu0 0.0
    %80 = vmatprep.subr.mxu0 0.0
    %81 = vmatpush1.msra.mxu0 0.0
    %82 = vmatprep.subr.mxu0 0.0
    %83 = vmatpush1.msra.mxu0 0.0
    %84 = vmatprep.subr.mxu0 0.0
    %85 = vmatpush1.msra.mxu0 0.0
    %86 = vmatprep.subr.mxu0 0.0
    %87 = vmatpush1.msra.mxu0 0.0
    %88 = vmatprep.subr.mxu0 0.0
    %89 = vmatpush1.msra.mxu0 0.0
    %90 = vmatprep.subr.mxu0 0.0
    %91 = vmatpush1.msra.mxu0 0.0
    %92 = vmatprep.subr.mxu0 0.0
    %93 = vmatpush1.msra.mxu0 0.0
    %94 = vmatprep.subr.mxu0 0.0
    %95 = vmatpush1.msra.mxu0 0.0
    %96 = vmatprep.subr.mxu0 0.0
    %97 = vmatpush1.msra.mxu0 0.0
    %98 = vmatprep.subr.mxu0 0.0
    %99 = vmatpush1.msra.mxu0 0.0
    %100 = vmatprep.subr.mxu0 0.0
    %101 = vmatpush1.msra.mxu0 0.0
    %102 = vmatprep.subr.mxu0 0.0
    %103 = vmatpush1.msra.mxu0 0.0
    %104 = vmatprep.subr.mxu0 0.0
    %105 = vmatpush1.msra.mxu0 0.0
    %106 = vmatprep.subr.mxu0 0.0
    %107 = vmatpush1.msra.mxu0 0.0
    %108 = vmatprep.subr.mxu0 0.0
    %109 = vmatpush1.msra.mxu0 0.0
    %110 = vmatprep.subr.mxu0 0.0
    %111 = vmatpush1.msra.mxu0 0.0
    %112 = vmatprep.subr.mxu0 0.0
    %113 = vmatpush1.msra.mxu0 0.0
    %114 = vmatprep.subr.mxu0 0.0
    %115 = vmatpush1.msra.mxu0 0.0
    %116 = vmatprep.subr.mxu0 0.0
    %117 = vmatpush1.msra.mxu0 0.0
    %118 = vmatprep.subr.mxu0 0.0
    %119 = vmatpush1.msra.mxu0 0.0
    %120 = vmatprep.subr.mxu0 0.0
    %121 = vmatpush1.msra.mxu0 0.0
    %122 = vmatprep.subr.mxu0 0.0
    %123 = vmatpush1.msra.mxu0 0.0
    %124 = vmatprep.subr.mxu0 0.0
    %125 = vmatpush1.msra.mxu0 0.0
    %126 = vmatprep.mubr.f32.mxu0 0.0
    %127 = vmatmul.mubr.f32.gmra.mrb[0].mxu0 %v60
    %v128 = vpop.f32.mrb[0].mxu0
    %v129 = vadd.f32 %v56, %v128
    %v130 = vpop.f32.mrb[0].mxu0
    %131 = vdwg.mxu0
    %v132 = vmax.f32 %v129, 0.0
    %v133 = vmin.f32 %v132, 1.0
    %vm134 = vcmask 197808
    %v135 = vsel %vm134, %v129, -inf
    %136 = vmax.xlane.f32.xlu0 %v135
    %v137 = vpop.xlane.xlu0 %136
    %v138 = vsub.f32 %v129, %v137
    %v139 = vmul.f32 %v138, 1.442695
    %v140 = vpow.pop %v139
    %142 = vrot.lane.b32.xlu0 %v140, 106
    %v143 = vpop.permute.xlu0 %142
    %vm145 = vcmask 17408
    %v146 = vsel %vm145, %v143, 0.0
    %147 = vadd.xlane.f32.xlu0 %v146
    %v148 = vpop.xlane.xlu0 %147
    %v149 = vrcp.pop %v148
    %v150 = vmul.f32 %v140, %v149
    %v151 = vmul.f32 %v133, %v133
    %vm152 = vcmask 156672
    %v153 = vsel %vm152, %v151, 0.0
    %154 = vadd.xlane.f32.xlu0 %v153
    %v155 = vpop.xlane.xlu0 %154
    %v156 = vmax.f32 %v155, 1e-16
    %v157 = vrsqrt.pop %v156
    %v158 = vmul.f32 %v44, %v44
    %v159 = vmul.f32 %v45, %v45
    %v160 = vmul.f32 %v46, %v46
    %v161 = vadd.f32 %v158, %v159
    %vm162 = vcmask 1043456
    %v163 = vsel %vm162, %v160, 0.0
    %v164 = vadd.f32 %v161, %v163
    %v165 = vrot.slane %v164, 4
    %v166 = vadd.f32 %v164, %v165
    %v167 = vrot.slane %v166, 2
    %v168 = vadd.f32 %v166, %v167
    %v169 = vrot.slane %v168, 1
    %v170 = vadd.f32 %v168, %v169
    %v171 = vmax.f32 %v170, 1e-16
    %v172 = vrsqrt.pop %v171
    %v173 = vmul.f32 %v133, %v157
    %v174 = vmul.f32 %v44, %v172
    %v175 = vmul.f32 %v45, %v172
    %v176 = vmul.f32 %v46, %v172
    %vm177 = vcmask 162816
    %v179 = vsel %vm177, %v173, 0
    %v182 = vsel %vm162, %v176, 0
    %184 = vmatprep.subr.mxu0 0.0
    %185 = vmatpush1.msra.mxu0 %v174
    %186 = vmatprep.subr.mxu0 0.0
    %187 = vmatpush1.msra.mxu0 %v175
    %188 = vmatprep.subr.mxu0 0.0
    %189 = vmatpush1.msra.mxu0 %v182
    %190 = vmatprep.subr.mxu0 0.0
    %191 = vmatpush1.msra.mxu0 0.0
    %192 = vmatprep.subr.mxu0 0.0
    %193 = vmatpush1.msra.mxu0 0.0
    %194 = vmatprep.subr.mxu0 0.0
    %195 = vmatpush1.msra.mxu0 0.0
    %196 = vmatprep.subr.mxu0 0.0
    %197 = vmatpush1.msra.mxu0 0.0
    %198 = vmatprep.subr.mxu0 0.0
    %199 = vmatpush1.msra.mxu0 0.0
    %200 = vmatprep.subr.mxu0 0.0
    %201 = vmatpush1.msra.mxu0 0.0
    %202 = vmatprep.subr.mxu0 0.0
    %203 = vmatpush1.msra.mxu0 0.0
    %204 = vmatprep.subr.mxu0 0.0
    %205 = vmatpush1.msra.mxu0 0.0
    %206 = vmatprep.subr.mxu0 0.0
    %207 = vmatpush1.msra.mxu0 0.0
    %208 = vmatprep.subr.mxu0 0.0
    %209 = vmatpush1.msra.mxu0 0.0
    %210 = vmatprep.subr.mxu0 0.0
    %211 = vmatpush1.msra.mxu0 0.0
    %212 = vmatprep.subr.mxu0 0.0
    %213 = vmatpush1.msra.mxu0 0.0
    %214 = vmatprep.subr.mxu0 0.0
    %215 = vmatpush1.msra.mxu0 0.0
    %216 = vmatprep.subr.mxu0 0.0
    %217 = vmatpush1.msra.mxu0 0.0
    %218 = vmatprep.subr.mxu0 0.0
    %219 = vmatpush1.msra.mxu0 0.0
    %220 = vmatprep.subr.mxu0 0.0
    %221 = vmatpush1.msra.mxu0 0.0
    %222 = vmatprep.subr.mxu0 0.0
    %223 = vmatpush1.msra.mxu0 0.0
    %224 = vmatprep.subr.mxu0 0.0
    %225 = vmatpush1.msra.mxu0 0.0
    %226 = vmatprep.subr.mxu0 0.0
    %227 = vmatpush1.msra.mxu0 0.0
    %228 = vmatprep.subr.mxu0 0.0
    %229 = vmatpush1.msra.mxu0 0.0
    %230 = vmatprep.subr.mxu0 0.0
    %231 = vmatpush1.msra.mxu0 0.0
    %232 = vmatprep.subr.mxu0 0.0
    %233 = vmatpush1.msra.mxu0 0.0
    %234 = vmatprep.subr.mxu0 0.0
    %235 = vmatpush1.msra.mxu0 0.0
    %236 = vmatprep.subr.mxu0 0.0
    %237 = vmatpush1.msra.mxu0 0.0
    %238 = vmatprep.subr.mxu0 0.0
    %239 = vmatpush1.msra.mxu0 0.0
    %240 = vmatprep.subr.mxu0 0.0
    %241 = vmatpush1.msra.mxu0 0.0
    %242 = vmatprep.subr.mxu0 0.0
    %243 = vmatpush1.msra.mxu0 0.0
    %244 = vmatprep.subr.mxu0 0.0
    %245 = vmatpush1.msra.mxu0 0.0
    %246 = vmatprep.subr.mxu0 0.0
    %247 = vmatpush1.msra.mxu0 0.0
    %248 = vmatprep.mubr.f32.mxu0 0.0
    %249 = vmatmul.mubr.f32.gmra.mrb[0].mxu0 %v179
    %v250 = vpop.f32.mrb[0].mxu0
    %v251 = vadd.f32 0.0, %v250
    %v252 = vpop.f32.mrb[0].mxu0
    %253 = vdwg.mxu0
    %255 = vset.pattern.permute.xlu0 20
    %256 = vperm.xlu0 %255, %v132
    %v257 = vpop.permute.xlu0 %256
    %v259 = vmul.f32 %v251, %v257
    %vm260 = vcmask 1041408
    %v261 = vsel %vm260, %v259, -inf
    %262 = vmax.xlane.f32.xlu0 %v261
    %v263 = vpop.xlane.xlu0 %262
    %v264 = vsub.f32 %v259, %v263
    %v265 = vmul.f32 %v264, 1.442695
    %v266 = vpow.pop %v265
    %v267 = vsel %vm260, %v266, 0.0
    %268 = vadd.xlane.f32.xlu0 %v267
    %v269 = vpop.xlane.xlu0 %268
    %v270 = vrcp.pop %v269
    %v271 = vmul.f32 %v266, %v270
    %273 = vset.pattern.permute.xlu0 21
    %274 = vperm.xlu0 %273, %v133
    %v275 = vpop.permute.xlu0 %274
    %v277 = vmul.f32 %v275, %v271
    %v278 = vsub.f32 1.0, %v133
    %280 = vset.pattern.permute.xlu0 21
    %281 = vperm.xlu0 %280, %v278
    %v282 = vpop.permute.xlu0 %281
    %v284 = vmul.f32 %v282, %v43
    %v285 = vadd.f32 %v277, %v284
    %287 = vset.pattern.permute.xlu0 23
    %288 = vperm.xlu0 %287, %v150
    %v289 = vpop.permute.xlu0 %288
    %v291 = vmul.f32 %v289, %v285
    %292 = vrot.lane.b32.xlu0 %v285, 127
    %v293 = vpop.permute.xlu0 %292
    %294 = vset.pattern.permute.xlu0 22
    %295 = vperm.xlu0 %294, %v150
    %v296 = vpop.permute.xlu0 %295
    %v298 = vmul.f32 %v296, %v293
    %v299 = vadd.f32 %v291, %v298
    %300 = vrot.lane.b32.xlu0 %v285, 1
    %v301 = vpop.permute.xlu0 %300
    %302 = vset.pattern.permute.xlu0 24
    %303 = vperm.xlu0 %302, %v150
    %v304 = vpop.permute.xlu0 %303
    %v306 = vmul.f32 %v304, %v301
    %v307 = vadd.f32 %v299, %v306
    %v309 = vrot.slane %v43, 2
    %v311 = vmul.f32 %v282, %v309
    %v312 = vadd.f32 %v277, %v311
    %v313 = vmul.f32 %v289, %v312
    %314 = vrot.lane.b32.xlu0 %v312, 127
    %v315 = vpop.permute.xlu0 %314
    %v316 = vmul.f32 %v296, %v315
    %v317 = vadd.f32 %v313, %v316
    %318 = vrot.lane.b32.xlu0 %v312, 1
    %v319 = vpop.permute.xlu0 %318
    %v320 = vmul.f32 %v304, %v319
    %v321 = vadd.f32 %v317, %v320
    %322 = vrot.lane.b32.xlu0 %v133, 103
    %v323 = vpop.permute.xlu0 %322
    %325 = vxpose.xlu0.b32.start [1/16] %v323, 128
    %326 = vxpose.xlu0.b32.cont [2/16] 0.0, 128
    %327 = vxpose.xlu0.b32.cont [3/16] 0.0, 128
    %328 = vxpose.xlu0.b32.cont [4/16] 0.0, 128
    %329 = vxpose.xlu0.b32.cont [5/16] 0.0, 128
    %330 = vxpose.xlu0.b32.cont [6/16] 0.0, 128
    %331 = vxpose.xlu0.b32.cont [7/16] 0.0, 128
    %332 = vxpose.xlu0.b32.cont [8/16] 0.0, 128
    %333 = vxpose.xlu0.b32.cont [9/16] 0.0, 128
    %334 = vxpose.xlu0.b32.cont [10/16] 0.0, 128
    %335 = vxpose.xlu0.b32.cont [11/16] 0.0, 128
    %336 = vxpose.xlu0.b32.cont [12/16] 0.0, 128
    %337 = vxpose.xlu0.b32.cont [13/16] 0.0, 128
    %338 = vxpose.xlu0.b32.cont [14/16] 0.0, 128
    %339 = vxpose.xlu0.b32.cont [15/16] 0.0, 128
    %340 = vxpose.xlu0.b32.end [16/16] 0.0, 128
    %v341 = vpop.trf.xlu0
    %v342 = vpop.trf.xlu0
    %v343 = vpop.trf.xlu0
    %v344 = vpop.trf.xlu0
    %v345 = vpop.trf.xlu0
    %v346 = vpop.trf.xlu0
    %v347 = vpop.trf.xlu0
    %v348 = vpop.trf.xlu0
    %v349 = vpop.trf.xlu0
    %v350 = vpop.trf.xlu0
    %v351 = vpop.trf.xlu0
    %v352 = vpop.trf.xlu0
    %v353 = vpop.trf.xlu0
    %v354 = vpop.trf.xlu0
    %v355 = vpop.trf.xlu0
    %v356 = vpop.trf.xlu0
    %vm357 = vcmask 15360
    %v359 = vsel %vm357, %v341, 0
    %v362 = vsel %vm357, %v342, 0
    %v365 = vsel %vm357, %v343, 0
    %v368 = vsel %vm357, %v344, 0
    %v371 = vsel %vm357, %v345, 0
    %v373 = vsel %vm260, %v43, 0
    %375 = vmatprep.subr.mxu0 0.0
    %376 = vmatpush1.msra.mxu0 %v373
    %377 = vmatprep.subr.mxu0 0.0
    %378 = vmatpush1.msra.mxu0 0.0
    %379 = vmatprep.subr.mxu0 0.0
    %380 = vmatpush1.msra.mxu0 0.0
    %381 = vmatprep.subr.mxu0 0.0
    %382 = vmatpush1.msra.mxu0 0.0
    %383 = vmatprep.subr.mxu0 0.0
    %384 = vmatpush1.msra.mxu0 0.0
    %385 = vmatprep.subr.mxu0 0.0
    %386 = vmatpush1.msra.mxu0 0.0
    %387 = vmatprep.subr.mxu0 0.0
    %388 = vmatpush1.msra.mxu0 0.0
    %389 = vmatprep.subr.mxu0 0.0
    %390 = vmatpush1.msra.mxu0 0.0
    %391 = vmatprep.subr.mxu0 0.0
    %392 = vmatpush1.msra.mxu0 0.0
    %393 = vmatprep.subr.mxu0 0.0
    %394 = vmatpush1.msra.mxu0 0.0
    %395 = vmatprep.subr.mxu0 0.0
    %396 = vmatpush1.msra.mxu0 0.0
    %397 = vmatprep.subr.mxu0 0.0
    %398 = vmatpush1.msra.mxu0 0.0
    %399 = vmatprep.subr.mxu0 0.0
    %400 = vmatpush1.msra.mxu0 0.0
    %401 = vmatprep.subr.mxu0 0.0
    %402 = vmatpush1.msra.mxu0 0.0
    %403 = vmatprep.subr.mxu0 0.0
    %404 = vmatpush1.msra.mxu0 0.0
    %405 = vmatprep.subr.mxu0 0.0
    %406 = vmatpush1.msra.mxu0 0.0
    %407 = vmatprep.subr.mxu0 0.0
    %408 = vmatpush1.msra.mxu0 0.0
    %409 = vmatprep.subr.mxu0 0.0
    %410 = vmatpush1.msra.mxu0 0.0
    %411 = vmatprep.subr.mxu0 0.0
    %412 = vmatpush1.msra.mxu0 0.0
    %413 = vmatprep.subr.mxu0 0.0
    %414 = vmatpush1.msra.mxu0 0.0
    %415 = vmatprep.subr.mxu0 0.0
    %416 = vmatpush1.msra.mxu0 0.0
    %417 = vmatprep.subr.mxu0 0.0
    %418 = vmatpush1.msra.mxu0 0.0
    %419 = vmatprep.subr.mxu0 0.0
    %420 = vmatpush1.msra.mxu0 0.0
    %421 = vmatprep.subr.mxu0 0.0
    %422 = vmatpush1.msra.mxu0 0.0
    %423 = vmatprep.subr.mxu0 0.0
    %424 = vmatpush1.msra.mxu0 0.0
    %425 = vmatprep.subr.mxu0 0.0
    %426 = vmatpush1.msra.mxu0 0.0
    %427 = vmatprep.subr.mxu0 0.0
    %428 = vmatpush1.msra.mxu0 0.0
    %429 = vmatprep.subr.mxu0 0.0
    %430 = vmatpush1.msra.mxu0 0.0
    %431 = vmatprep.subr.mxu0 0.0
    %432 = vmatpush1.msra.mxu0 0.0
    %433 = vmatprep.subr.mxu0 0.0
    %434 = vmatpush1.msra.mxu0 0.0
    %435 = vmatprep.subr.mxu0 0.0
    %436 = vmatpush1.msra.mxu0 0.0
    %437 = vmatprep.subr.mxu0 0.0
    %438 = vmatpush1.msra.mxu0 0.0
    %439 = vmatprep.mubr.f32.mxu0 0.0
    %440 = vmatmul.mubr.f32.gmra.mrb[0].mxu0 %v359
    %v441 = vpop.f32.mrb[0].mxu0
    %v442 = vadd.f32 0.0, %v441
    %v443 = vpop.f32.mrb[0].mxu0
    %444 = vmatprep.mubr.f32.mxu0 0.0
    %445 = vmatmul.mubr.f32.gmra.mrb[0].mxu0 %v362
    %v446 = vpop.f32.mrb[0].mxu0
    %v447 = vadd.f32 0.0, %v446
    %v448 = vpop.f32.mrb[0].mxu0
    %449 = vmatprep.mubr.f32.mxu0 0.0
    %450 = vmatmul.mubr.f32.gmra.mrb[0].mxu0 %v365
    %v451 = vpop.f32.mrb[0].mxu0
    %v452 = vadd.f32 0.0, %v451
    %v453 = vpop.f32.mrb[0].mxu0
    %454 = vmatprep.mubr.f32.mxu0 0.0
    %455 = vmatmul.mubr.f32.gmra.mrb[0].mxu0 %v368
    %v456 = vpop.f32.mrb[0].mxu0
    %v457 = vadd.f32 0.0, %v456
    %v458 = vpop.f32.mrb[0].mxu0
    %459 = vmatprep.mubr.f32.mxu0 0.0
    %460 = vmatmul.mubr.f32.gmra.mrb[0].mxu0 %v371
    %v461 = vpop.f32.mrb[0].mxu0
    %v462 = vadd.f32 0.0, %v461
    %v463 = vpop.f32.mrb[0].mxu0
    %464 = vdwg.mxu0
    %v465 = vsub.f32 1.0, %v442
    %v466 = vsub.f32 1.0, %v447
    %v467 = vsub.f32 1.0, %v452
    %v468 = vmul.f32 %v44, %v465
    %v469 = vmul.f32 %v45, %v466
    %v470 = vmul.f32 %v46, %v467
    %v474 = vrot.slane %v452, 4
    %v475 = vrot.slane %v457, 4
    %v476 = vsel %vm162, %v474, %v475
    %v477 = vrot.slane %v462, 4
    %v478 = vsel %vm162, %v475, %v477
    %v482 = vadd.f32 %v468, %v476
    %v483 = vadd.f32 %v469, %v478
    %v484 = vadd.f32 %v470, %v477
    %485 = vmatprep.subr.mxu0 0.0
    %486 = vmatpush1.xpose.msra.mxu0 %v44
    %487 = vmatprep.subr.mxu0 0.0
    %488 = vmatpush1.xpose.msra.mxu0 %v45
    %489 = vmatprep.subr.mxu0 0.0
    %490 = vmatpush1.xpose.msra.mxu0 %v46
    %491 = vmatprep.subr.mxu0 0.0
    %492 = vmatpush1.xpose.msra.mxu0 0.0
    %493 = vmatprep.subr.mxu0 0.0
    %494 = vmatpush1.xpose.msra.mxu0 0.0
    %495 = vmatprep.subr.mxu0 0.0
    %496 = vmatpush1.xpose.msra.mxu0 0.0
    %497 = vmatprep.subr.mxu0 0.0
    %498 = vmatpush1.xpose.msra.mxu0 0.0
    %499 = vmatprep.subr.mxu0 0.0
    %500 = vmatpush1.xpose.msra.mxu0 0.0
    %501 = vmatprep.subr.mxu0 0.0
    %502 = vmatpush1.xpose.msra.mxu0 0.0
    %503 = vmatprep.subr.mxu0 0.0
    %504 = vmatpush1.xpose.msra.mxu0 0.0
    %505 = vmatprep.subr.mxu0 0.0
    %506 = vmatpush1.xpose.msra.mxu0 0.0
    %507 = vmatprep.subr.mxu0 0.0
    %508 = vmatpush1.xpose.msra.mxu0 0.0
    %509 = vmatprep.subr.mxu0 0.0
    %510 = vmatpush1.xpose.msra.mxu0 0.0
    %511 = vmatprep.subr.mxu0 0.0
    %512 = vmatpush1.xpose.msra.mxu0 0.0
    %513 = vmatprep.subr.mxu0 0.0
    %514 = vmatpush1.xpose.msra.mxu0 0.0
    %515 = vmatprep.subr.mxu0 0.0
    %516 = vmatpush1.xpose.msra.mxu0 0.0
    %517 = vmatprep.subr.mxu0 0.0
    %518 = vmatpush1.xpose.msra.mxu0 0.0
    %519 = vmatprep.subr.mxu0 0.0
    %520 = vmatpush1.xpose.msra.mxu0 0.0
    %521 = vmatprep.subr.mxu0 0.0
    %522 = vmatpush1.xpose.msra.mxu0 0.0
    %523 = vmatprep.subr.mxu0 0.0
    %524 = vmatpush1.xpose.msra.mxu0 0.0
    %525 = vmatprep.subr.mxu0 0.0
    %526 = vmatpush1.xpose.msra.mxu0 0.0
    %527 = vmatprep.subr.mxu0 0.0
    %528 = vmatpush1.xpose.msra.mxu0 0.0
    %529 = vmatprep.subr.mxu0 0.0
    %530 = vmatpush1.xpose.msra.mxu0 0.0
    %531 = vmatprep.subr.mxu0 0.0
    %532 = vmatpush1.xpose.msra.mxu0 0.0
    %533 = vmatprep.subr.mxu0 0.0
    %534 = vmatpush1.xpose.msra.mxu0 0.0
    %535 = vmatprep.subr.mxu0 0.0
    %536 = vmatpush1.xpose.msra.mxu0 0.0
    %537 = vmatprep.subr.mxu0 0.0
    %538 = vmatpush1.xpose.msra.mxu0 0.0
    %539 = vmatprep.subr.mxu0 0.0
    %540 = vmatpush1.xpose.msra.mxu0 0.0
    %541 = vmatprep.subr.mxu0 0.0
    %542 = vmatpush1.xpose.msra.mxu0 0.0
    %543 = vmatprep.subr.mxu0 0.0
    %544 = vmatpush1.xpose.msra.mxu0 0.0
    %545 = vmatprep.subr.mxu0 0.0
    %546 = vmatpush1.xpose.msra.mxu0 0.0
    %547 = vmatprep.subr.mxu0 0.0
    %548 = vmatpush1.xpose.msra.mxu0 0.0
    %549 = vmatprep.mubr.f32.mxu0 0.0
    %550 = vmatmul.mubr.f32.gmra.mrb[0].mxu0 %v309
    %v551 = vpop.f32.mrb[0].mxu0
    %v552 = vadd.f32 0.0, %v551
    %v553 = vpop.f32.mrb[0].mxu0
    %554 = vdwg.mxu0
    %555 = vst.msk [vmem:[#allocation4] sm:$0x3] %vm152, %v552
    %556 = vst [vmem:[#allocation2] sm:$0x3] %v307
    %557 = vst [vmem:[#allocation2 + $0x2] sm:$0x3] %v321
    %558 = vst [vmem:[#allocation3] sm:$0xff] %v482
    %559 = vst [vmem:[#allocation3 + $0x8] sm:$0xff] %v483
    %560 = vst [vmem:[#allocation3 + $0x10] sm:$0xf] %v484
    // Predicated region
    $region30: #{emm_ntm_forward.1} parent=1 // pred_check
      %p561 = pneg %p28
    $region31: #{emm_ntm_forward.1} parent=1 // pred_check_branch
      %563 = sbr.rel (%p561) target = $region33
    $region32: #{emm_ntm_forward.1} parent=1 // pred_region
      %v564 = vld [vmem:[#allocation2] sm:$0x3]
      %565 = vst [vmem:[%s8] sm:$0x3] %v564
      %v566 = vld [vmem:[#allocation2 + $0x2] sm:$0x3]
      %567 = vst [vmem:[%s7] sm:$0x3] %v566
      %v568 = vld [vmem:[#allocation3] sm:$0xff]
      %v569 = vld [vmem:[#allocation3 + $0x8] sm:$0xff]
      %v570 = vld [vmem:[#allocation3 + $0x10] sm:$0xf]
      %571 = vst [vmem:[%s9] sm:$0xff] %v568
      %572 = vst [vmem:[%s9 + $0x8] sm:$0xff] %v569
      %573 = vst [vmem:[%s9 + $0x10] sm:$0xf] %v570
    $region33: #{emm_ntm_forward.1} parent=1 // pred_fallthru
      _
    // Predicated region
    $region34: #{emm_ntm_forward.1} parent=1 // pred_check
      _
    $region35: #{emm_ntm_forward.1} parent=1 // pred_check_branch
      %575 = sbr.rel (0) target = $region37
    $region36: #{emm_ntm_forward.1} parent=1 // pred_region
      %s577 = ssub.s32 32, 32
      %578 = vsyncadd [#allocation5], %s577
      %s580 = sshll.u32 [#allocation4], 4
      %s581 = int_to_ptr.vmem [resolvable:$true] %s580
      %583 = dma.vmem_to_hbm [thread:$0]  %s581, 32, %s6, [#allocation5]
    $region37: #{emm_ntm_forward.1} parent=1 // pred_fallthru
      _
    // Predicated region
    $region38: #{emm_ntm_forward.1} parent=1 // pred_check
      _
    $region39: #{emm_ntm_forward.1} parent=1 // pred_check_branch
      %585 = sbr.rel (0) target = $region41
    $region40: #{emm_ntm_forward.1} parent=1 // pred_region
      _
    $region41: #{emm_ntm_forward.1} parent=1 // pred_fallthru
      _
    // Predicated region
    $region42: #{emm_ntm_forward.1} parent=1 // pred_check
      _
    $region43: #{emm_ntm_forward.1} parent=1 // pred_check_branch
      %587 = sbr.rel (0) target = $region45
    $region44: #{emm_ntm_forward.1} parent=1 // pred_region
      _
    $region45: #{emm_ntm_forward.1} parent=1 // pred_fallthru
      _
    // Predicated region
    $region46: #{emm_ntm_forward.1} parent=1 // pred_check
      _
    $region47: #{emm_ntm_forward.1} parent=1 // pred_check_branch
      %589 = sbr.rel (0) target = $region49
    $region48: #{emm_ntm_forward.1} parent=1 // pred_region
      _
    $region49: #{emm_ntm_forward.1} parent=1 // pred_fallthru
      _
    // Predicated region
    $region50: #{emm_ntm_forward.1} parent=1 // pred_check
      _
    $region51: #{emm_ntm_forward.1} parent=1 // pred_check_branch
      %591 = sbr.rel (0) target = $region53
    $region52: #{emm_ntm_forward.1} parent=1 // pred_region
      %592 = dma.done [#allocation5], 32
    $region53: #{emm_ntm_forward.1} parent=1 // pred_fallthru
      _
    // Predicated region
    $region54: #{emm_ntm_forward.1} parent=1 // pred_check
      _
    $region55: #{emm_ntm_forward.1} parent=1 // pred_check_branch
      %594 = sbr.rel (0) target = $region57
    $region56: #{emm_ntm_forward.1} parent=1 // pred_region
      _
    $region57: #{emm_ntm_forward.1} parent=1 // pred_fallthru
      _
    // Predicated region
    $region58: #{emm_ntm_forward.1} parent=1 // pred_check
      _
    $region59: #{emm_ntm_forward.1} parent=1 // pred_check_branch
      %596 = sbr.rel (0) target = $region61
    $region60: #{emm_ntm_forward.1} parent=1 // pred_region
      _
    $region61: #{emm_ntm_forward.1} parent=1 // pred_fallthru
      _
    // Predicated region
    $region62: #{emm_ntm_forward.1} parent=1 // pred_check
      _
    $region63: #{emm_ntm_forward.1} parent=1 // pred_check_branch
      %598 = sbr.rel (0) target = $region65
    $region64: #{emm_ntm_forward.1} parent=1 // pred_region
      _
    $region65: #{emm_ntm_forward.1} parent=1 // pred_fallthru
      _
    %599 = vsyncpa [#allocation5], 1

</llo_original>
